<compile_context>
chip_gen: v7x
topology: tpu7x:2x2x1
jax: 0.10.0
libtpu: 0.0.40
codegen_flags: <defaults>
</compile_context>

<pallas_src>
import functools

import jax
import jax.numpy as jnp
from jax.experimental import pallas as pl
from jax.experimental.pallas import tpu as pltpu


def _round_up(x, m):
    return (x + m - 1) // m * m


def _cdiv(a, b):
    return -(-a // b)


# ----------------------------- Pallas kernel --------------------------------
def _timm_forward_kernel(
    patches_ref,    # VMEM [1, M, K]       bf16   M = bb*N*P patch rows (matmul LHS)
    wrow_ref,       # VMEM [1, BB, N*P]    f32    per-row weight = mask/(clamp(valid)*P)
    wp_ref,         # VMEM [K, Fp]         bf16   patch-embed ("conv stem") weight
    bp_ref,         # VMEM [1, Fp]         f32
    wh_ref,         # VMEM [Fp, NCp]       bf16   head weight
    bh_ref,         # VMEM [1, NCp]        f32
    feat_out_ref,   # VMEM [1, BB, Fp]     bf16
    logit_out_ref,  # VMEM [1, BB, NCp]    bf16
):
    x = patches_ref[0]                                   # [M, K] bf16 — exactly the LHS
    _, bb, npix = wrow_ref.shape
    f_pad = wp_ref.shape[1]

    # --- backbone: patch embed (bf16 MXU, f32 accumulation) + bias + ReLU -----
    h = jnp.dot(x, wp_ref[...], preferred_element_type=jnp.float32)   # [M, Fp] f32
    h = jnp.maximum(h + bp_ref[...], 0.0)

    # --- global average pool + masked mean over N images, folded into ONE -----
    # per-row weighted reduce (broadcast-mul on VPU + sublane sum on XLU).
    wrow = wrow_ref[0]                                                # [bb, N*P] f32
    feat = jnp.sum(wrow[:, :, None] * h.reshape(bb, npix, f_pad), axis=1)  # [bb, Fp]

    # --- head: one matmul on the mixed features; bias scaled by sum(mask)/denom
    bias_scale = jnp.sum(wrow, axis=1, keepdims=True)                 # [bb, 1]
    logits = jnp.dot(
        feat.astype(wh_ref.dtype), wh_ref[...],
        preferred_element_type=jnp.float32,
    ) + bias_scale * bh_ref[...]                                      # [bb, NCp]

    feat_out_ref[...] = feat.astype(feat_out_ref.dtype)[None]
    logit_out_ref[...] = logits.astype(logit_out_ref.dtype)[None]


# ------------------------------ JAX wrapper ----------------------------------
def _patchify(images, ph, pw):
    """[B, N, C, H, W] -> [B, N*P, K] with K = C*ph*pw (channel-major, n-major rows)."""
    b, n, c, h, w = images.shape
    hp, wp_ = h // ph, w // pw
    x = images.reshape(b, n, c, hp, ph, wp_, pw)
    x = jnp.transpose(x, (0, 1, 3, 5, 2, 4, 6))           # [B, N, Hp, Wp, C, ph, pw]
    return x.reshape(b, n * hp * wp_, c * ph * pw)


def prepare_params(params):
    """One-time, out-of-jit padding of weights/biases to lane-dense dims."""
    wp, bp, wh, bh = params["wp"], params["bp"], params["wh"], params["bh"]
    k, f = wp.shape
    nc = wh.shape[1]
    f_pad, nc_pad = _round_up(f, 128), _round_up(nc, 128)
    wp_p = jnp.zeros((k, f_pad), jnp.bfloat16).at[:, :f].set(wp.astype(jnp.bfloat16))
    bp_p = jnp.zeros((1, f_pad), jnp.float32).at[:, :f].set(bp.astype(jnp.float32))
    wh_p = jnp.zeros((f_pad, nc_pad), jnp.bfloat16).at[:f, :nc].set(wh.astype(jnp.bfloat16))
    bh_p = jnp.zeros((1, nc_pad), jnp.float32).at[:, :nc].set(bh.astype(jnp.float32))
    return dict(wp=wp_p, bp=bp_p, wh=wh_p, bh=bh_p,
                k=int(k), f=int(f), nc=int(nc), f_pad=int(f_pad), nc_pad=int(nc_pad))


def _vmem_capacity_bytes():
    try:
        cap = getattr(pltpu.get_tpu_info(), "vmem_capacity_bytes", None)
        if cap:
            return int(cap)
    except Exception:
        pass
    return 64 << 20          # conservative fallback (v7x per-TC physical VMEM)


def _choose_block_b(b, n, p, k, f_pad, nc_pad, vmem_budget):
    """Samples per grid step: target a 2K-8K-row M-tile within the VMEM budget."""
    rows_per_sample = n * p
    # per-row VMEM: double-buffered bf16 patch row + f32 h row + bf16 output slack
    bytes_per_row = 2 * (k * 2) + f_pad * 4 + f_pad * 2
    weight_bytes = (k * f_pad + f_pad * nc_pad) * 2 + (f_pad + nc_pad) * 4
    usable = max(vmem_budget - 2 * weight_bytes, bytes_per_row * rows_per_sample)
    max_rows = usable // bytes_per_row
    target_rows = max(rows_per_sample, min(8192, max_rows))
    bb = min(b, max(1, target_rows // rows_per_sample))
    # keep >=2 grid steps (v7x 2 TensorCores / megacore) while the tile stays useful
    if _cdiv(b, bb) < 2 and b > 1 and _cdiv(b, 2) * rows_per_sample >= 1024:
        bb = _cdiv(b, 2)
    # even out block sizes so batch padding (to a multiple of bb) stays minimal
    if bb < b:
        bb = _cdiv(b, _cdiv(b, bb))
    return bb


@functools.partial(
    jax.jit,
    static_argnames=("patch", "bb", "f", "nc", "f_pad", "nc_pad", "vmem_limit"),
)
def _forward_jit(images, image_valid_num, wp_p, bp_p, wh_p, bh_p,
                 *, patch, bb, f, nc, f_pad, nc_pad, vmem_limit):
    b, n, c, h, w = images.shape
    p = (h // patch) * (w // patch)
    k = c * patch * patch

    # --- pad batch to a multiple of bb with valid=0 samples (exact zeros) ------
    b_pad = _round_up(b, bb)
    g = b_pad // bb
    if b_pad != b:
        images = jnp.pad(images, ((0, b_pad - b), (0, 0), (0, 0), (0, 0), (0, 0)))
        image_valid_num = jnp.pad(image_valid_num, ((0, b_pad - b),))

    # --- bf16 patches emitted directly in the [g, M, K] layout the kernel uses --
    patches = _patchify(images.astype(jnp.bfloat16), patch, patch)   # [B, N*P, K]
    patches_g = patches.reshape(g, bb * n * p, k)

    # --- per-row mixing weights: mask / clamp(valid,1e-6) / P, n-major order ----
    valid_f = image_valid_num.astype(jnp.float32)
    steps = jnp.arange(n, dtype=jnp.float32)
    mask = (steps[None, :] < valid_f[:, None]).astype(jnp.float32)          # [B, N]
    wmix = mask / jnp.maximum(valid_f, 1e-6)[:, None]                       # [B, N]
    wrow = jnp.broadcast_to((wmix * (1.0 / p))[:, :, None], (b_pad, n, p))
    wrow_g = wrow.reshape(g, bb, n * p)
    # NOTE: n*p is a multiple of 8 here (p % 8 == 0), so the in-kernel
    # [M, Fp] -> [bb, n*p, Fp] reshape is layout-preserving (no VMEM copy).

    feat3, logit3 = pl.pallas_call(
        _timm_forward_kernel,
        grid=(g,),
        in_specs=[
            pl.BlockSpec((1, bb * n * p, k), lambda i: (i, 0, 0)),
            pl.BlockSpec((1, bb, n * p), lambda i: (i, 0, 0)),
            pl.BlockSpec((k, f_pad), lambda i: (0, 0)),
            pl.BlockSpec((1, f_pad), lambda i: (0, 0)),
            pl.BlockSpec((f_pad, nc_pad), lambda i: (0, 0)),
            pl.BlockSpec((1, nc_pad), lambda i: (0, 0)),
        ],
        out_specs=(
            pl.BlockSpec((1, bb, f_pad), lambda i: (i, 0, 0)),
            pl.BlockSpec((1, bb, nc_pad), lambda i: (i, 0, 0)),
        ),
        out_shape=(
            jax.ShapeDtypeStruct((g, bb, f_pad), jnp.bfloat16),
            jax.ShapeDtypeStruct((g, bb, nc_pad), jnp.bfloat16),
        ),
        compiler_params=pltpu.CompilerParams(
            dimension_semantics=("parallel",),
            vmem_limit_bytes=int(vmem_limit),
        ),
    )(patches_g, wrow_g, wp_p, bp_p, wh_p, bh_p)

    features = feat3.reshape(b_pad, f_pad)[:b, :f].astype(jnp.float32)
    logits = logit3.reshape(b_pad, nc_pad)[:b, :nc].astype(jnp.float32)
    return features, logits


def timm_image_forward(images, image_valid_num, prepared, patch=4):
    """Returns (features [B, F], logits [B, NC]) like the PyTorch forward."""
    b, n, c, h, w = images.shape
    p = (h // patch) * (w // patch)
    assert prepared["k"] == c * patch * patch

    vmem_cap = _vmem_capacity_bytes()
    bb = _choose_block_b(b, n, p, prepared["k"], prepared["f_pad"],
                         prepared["nc_pad"], vmem_budget=vmem_cap // 2)
    vmem_limit = min(vmem_cap * 3 // 4, 100 << 20)
    return _forward_jit(
        images, image_valid_num,
        prepared["wp"], prepared["bp"], prepared["wh"], prepared["bh"],
        patch=patch, bb=int(bb),
        f=prepared["f"], nc=prepared["nc"],
        f_pad=prepared["f_pad"], nc_pad=prepared["nc_pad"],
        vmem_limit=int(vmem_limit),
    )


# ------------------------- pure-JAX reference (checking) ---------------------
def timm_image_forward_ref(images, image_valid_num, params, patch=4):
    """Module-faithful reference: per-image logits, mask, clamp-divide average."""
    b, n, c, h, w = images.shape
    wp, bp, wh, bh = params["wp"], params["bp"], params["wh"], params["bh"]
    p = (h // patch) * (w // patch)
    patches = _patchify(images.astype(jnp.bfloat16), patch, patch).reshape(b, n, p, -1)
    hdd = jnp.einsum("bnpk,kf->bnpf", patches, wp.astype(jnp.bfloat16),
                     preferred_element_type=jnp.float32)
    hdd = jnp.maximum(hdd + bp.astype(jnp.float32), 0.0)
    per_feat = hdd.sum(axis=2) * (1.0 / p)                            # [B,N,F] f32
    per_logit = jnp.einsum("bnf,fc->bnc", per_feat.astype(jnp.bfloat16),
                           wh.astype(jnp.bfloat16),
                           preferred_element_type=jnp.float32) + bh.astype(jnp.float32)
    steps = jnp.arange(n)
    mask = (steps[None, :] < image_valid_num[:, None]).astype(jnp.float32)
    denom = jnp.maximum(image_valid_num.astype(jnp.float32), 1e-6)[:, None]
    features = (per_feat * mask[:, :, None]).sum(axis=1) / denom
    logits = (per_logit * mask[:, :, None]).sum(axis=1) / denom
    return features, logits


# ---------------------------------- main -------------------------------------
if __name__ == "__main__":
    key = jax.random.PRNGKey(0)
    k_img, k_wp, k_bp, k_wh, k_bh = jax.random.split(key, 5)

    B, N, C, H, W = 2, 3, 4, 16, 16          # small shapes consistent with [N,C,H,W] images
    PATCH = 4
    K = C * PATCH * PATCH                    # 64
    F = 32                                   # backbone num_features
    NUM_CLASSES = 8

    images = jax.random.normal(k_img, (B, N, C, H, W), dtype=jnp.float32)
    image_valid_num = jnp.array([2, 3], dtype=jnp.int32)

    params = {
        "wp": (0.05 * jax.random.normal(k_wp, (K, F), jnp.float32)).astype(jnp.bfloat16),
        "bp": 0.01 * jax.random.normal(k_bp, (1, F), jnp.float32),
        "wh": (0.05 * jax.random.normal(k_wh, (F, NUM_CLASSES), jnp.float32)).astype(jnp.bfloat16),
        "bh": 0.01 * jax.random.normal(k_bh, (1, NUM_CLASSES), jnp.float32),
    }
    prepared = prepare_params(params)        # one-time padded weights

    features, logits = timm_image_forward(images, image_valid_num, prepared, patch=PATCH)
    features = jax.block_until_ready(features)
    logits = jax.block_until_ready(logits)

    ref_features, ref_logits = timm_image_forward_ref(
        images, image_valid_num, params, patch=PATCH
    )

    assert features.shape == (B, F) and logits.shape == (B, NUM_CLASSES)
    assert jnp.allclose(features, ref_features, atol=2e-2, rtol=2e-2)
    assert jnp.allclose(logits, ref_logits, atol=2e-2, rtol=2e-2)

    print("KERNEL_OK")
</pallas_src>

<mosaic_0001>
module attributes {stable_mosaic.version = 11 : i64} {
  func.func @_timm_forward_kernel(%arg0: i32, %arg1: memref<1x96x64xbf16, #tpu.memory_space<vmem>>, %arg2: memref<1x2x48xf32, #tpu.memory_space<vmem>>, %arg3: memref<64x128xbf16, #tpu.memory_space<vmem>>, %arg4: memref<1x128xf32, #tpu.memory_space<vmem>>, %arg5: memref<128x128xbf16, #tpu.memory_space<vmem>>, %arg6: memref<1x128xf32, #tpu.memory_space<vmem>>, %arg7: memref<1x2x128xbf16, #tpu.memory_space<vmem>>, %arg8: memref<1x2x128xbf16, #tpu.memory_space<vmem>>) attributes {dimension_semantics = [#tpu.dimension_semantics<parallel>], iteration_bounds = array<i64: 1>, scalar_prefetch = 0 : i64, scratch_operands = 0 : i64, tpu.core_type = #tpu.core_type<tc>, window_params = [{transform_indices = @transform_0, window_bounds = array<i64: 1, 96, 64>}, {transform_indices = @transform_1, window_bounds = array<i64: 1, 2, 48>}, {pipeline_mode = #tpu.pipeline_mode<synchronous>, transform_indices = @transform_2, window_bounds = array<i64: 64, 128>}, {pipeline_mode = #tpu.pipeline_mode<synchronous>, transform_indices = @transform_3, window_bounds = array<i64: 1, 128>}, {pipeline_mode = #tpu.pipeline_mode<synchronous>, transform_indices = @transform_4, window_bounds = array<i64: 128, 128>}, {pipeline_mode = #tpu.pipeline_mode<synchronous>, transform_indices = @transform_5, window_bounds = array<i64: 1, 128>}, {transform_indices = @transform_6, window_bounds = array<i64: 1, 2, 128>}, {transform_indices = @transform_7, window_bounds = array<i64: 1, 2, 128>}]} {
    %c0 = arith.constant 0 : index
    %c0_0 = arith.constant 0 : index
    %c0_1 = arith.constant 0 : index
    %0 = vector.load %arg1[%c0, %c0_0, %c0_1] : memref<1x96x64xbf16, #tpu.memory_space<vmem>>, vector<1x96x64xbf16>
    %1 = vector.shape_cast %0 : vector<1x96x64xbf16> to vector<96x64xbf16>
    %c0_2 = arith.constant 0 : index
    %c0_3 = arith.constant 0 : index
    %2 = vector.load %arg3[%c0_2, %c0_3] : memref<64x128xbf16, #tpu.memory_space<vmem>>, vector<64x128xbf16>
    %cst = arith.constant dense<0.000000e+00> : vector<96x128xf32>
    %3 = tpu.matmul %1, %2, %cst {dimension_numbers = #tpu.dot_dimension_numbers<[1], [0], [0], [1], [0, 0, 1, 1], [], []>} : vector<96x64xbf16>, vector<64x128xbf16>, vector<96x128xf32> -> vector<96x128xf32>
    %c0_4 = arith.constant 0 : index
    %c0_5 = arith.constant 0 : index
    %4 = vector.load %arg4[%c0_4, %c0_5] : memref<1x128xf32, #tpu.memory_space<vmem>>, vector<1x128xf32>
    %5 = vector.broadcast %4 : vector<1x128xf32> to vector<96x128xf32>
    %6 = arith.addf %3, %5 : vector<96x128xf32>
    %cst_6 = arith.constant 0.000000e+00 : f32
    %7 = vector.broadcast %cst_6 : f32 to vector<96x128xf32>
    %8 = arith.maximumf %6, %7 : vector<96x128xf32>
    %c0_7 = arith.constant 0 : index
    %c0_8 = arith.constant 0 : index
    %c0_9 = arith.constant 0 : index
    %9 = vector.load %arg2[%c0_7, %c0_8, %c0_9] : memref<1x2x48xf32, #tpu.memory_space<vmem>>, vector<1x2x48xf32>
    %10 = vector.shape_cast %9 : vector<1x2x48xf32> to vector<2x48xf32>
    %11 = vector.shape_cast %10 : vector<2x48xf32> to vector<2x48x1xf32>
    %12 = vector.shape_cast %8 : vector<96x128xf32> to vector<2x48x128xf32>
    %13 = vector.broadcast %11 : vector<2x48x1xf32> to vector<2x48x128xf32>
    %14 = arith.mulf %13, %12 : vector<2x48x128xf32>
    %cst_10 = arith.constant dense<0.000000e+00> : vector<2x128xf32>
    %15 = vector.multi_reduction <add>, %14, %cst_10 [1] : vector<2x48x128xf32> to vector<2x128xf32>
    %cst_11 = arith.constant dense<0.000000e+00> : vector<2xf32>
    %16 = vector.multi_reduction <add>, %10, %cst_11 [1] : vector<2x48xf32> to vector<2xf32>
    %17 = vector.shape_cast %16 : vector<2xf32> to vector<2x1xf32>
    %18 = arith.truncf %15 : vector<2x128xf32> to vector<2x128xbf16>
    %c0_12 = arith.constant 0 : index
    %c0_13 = arith.constant 0 : index
    %19 = vector.load %arg5[%c0_12, %c0_13] : memref<128x128xbf16, #tpu.memory_space<vmem>>, vector<128x128xbf16>
    %cst_14 = arith.constant dense<0.000000e+00> : vector<2x128xf32>
    %20 = tpu.matmul %18, %19, %cst_14 {dimension_numbers = #tpu.dot_dimension_numbers<[1], [0], [0], [1], [0, 0, 1, 1], [], []>} : vector<2x128xbf16>, vector<128x128xbf16>, vector<2x128xf32> -> vector<2x128xf32>
    %c0_15 = arith.constant 0 : index
    %c0_16 = arith.constant 0 : index
    %21 = vector.load %arg6[%c0_15, %c0_16] : memref<1x128xf32, #tpu.memory_space<vmem>>, vector<1x128xf32>
    %22 = vector.broadcast %17 : vector<2x1xf32> to vector<2x128xf32>
    %23 = vector.broadcast %21 : vector<1x128xf32> to vector<2x128xf32>
    %24 = arith.mulf %22, %23 : vector<2x128xf32>
    %25 = arith.addf %20, %24 : vector<2x128xf32>
    %26 = arith.truncf %15 : vector<2x128xf32> to vector<2x128xbf16>
    %27 = vector.shape_cast %26 : vector<2x128xbf16> to vector<1x2x128xbf16>
    %c0_17 = arith.constant 0 : index
    %c0_18 = arith.constant 0 : index
    %c0_19 = arith.constant 0 : index
    %28 = vector.load %arg7[%c0_17, %c0_18, %c0_19] : memref<1x2x128xbf16, #tpu.memory_space<vmem>>, vector<1x2x128xbf16>
    tpu.vector_store %arg7[%c0_17, %c0_18, %c0_19], %27 {strides = array<i32>} : memref<1x2x128xbf16, #tpu.memory_space<vmem>>, vector<1x2x128xbf16>,
    %29 = arith.truncf %25 : vector<2x128xf32> to vector<2x128xbf16>
    %30 = vector.shape_cast %29 : vector<2x128xbf16> to vector<1x2x128xbf16>
    %c0_20 = arith.constant 0 : index
    %c0_21 = arith.constant 0 : index
    %c0_22 = arith.constant 0 : index
    %31 = vector.load %arg8[%c0_20, %c0_21, %c0_22] : memref<1x2x128xbf16, #tpu.memory_space<vmem>>, vector<1x2x128xbf16>
    tpu.vector_store %arg8[%c0_20, %c0_21, %c0_22], %30 {strides = array<i32>} : memref<1x2x128xbf16, #tpu.memory_space<vmem>>, vector<1x2x128xbf16>,
    return
  }
  func.func @transform_0(%arg0: i32) -> (i32, i32, i32) {
    %c0_i32 = arith.constant 0 : i32
    %c0_i32_0 = arith.constant 0 : i32
    %c0_i32_1 = arith.constant 0 : i32
    return %arg0, %c0_i32, %c0_i32_0 : i32, i32, i32
  }
  func.func @transform_1(%arg0: i32) -> (i32, i32, i32) {
    %c0_i32 = arith.constant 0 : i32
    %c0_i32_0 = arith.constant 0 : i32
    %c0_i32_1 = arith.constant 0 : i32
    return %arg0, %c0_i32, %c0_i32_0 : i32, i32, i32
  }
  func.func @transform_2(%arg0: i32) -> (i32, i32) {
    %c0_i32 = arith.constant 0 : i32
    %c0_i32_0 = arith.constant 0 : i32
    %c0_i32_1 = arith.constant 0 : i32
    return %c0_i32, %c0_i32_0 : i32, i32
  }
  func.func @transform_3(%arg0: i32) -> (i32, i32) {
    %c0_i32 = arith.constant 0 : i32
    %c0_i32_0 = arith.constant 0 : i32
    %c0_i32_1 = arith.constant 0 : i32
    return %c0_i32, %c0_i32_0 : i32, i32
  }
  func.func @transform_4(%arg0: i32) -> (i32, i32) {
    %c0_i32 = arith.constant 0 : i32
    %c0_i32_0 = arith.constant 0 : i32
    %c0_i32_1 = arith.constant 0 : i32
    return %c0_i32, %c0_i32_0 : i32, i32
  }
  func.func @transform_5(%arg0: i32) -> (i32, i32) {
    %c0_i32 = arith.constant 0 : i32
    %c0_i32_0 = arith.constant 0 : i32
    %c0_i32_1 = arith.constant 0 : i32
    return %c0_i32, %c0_i32_0 : i32, i32
  }
  func.func @transform_6(%arg0: i32) -> (i32, i32, i32) {
    %c0_i32 = arith.constant 0 : i32
    %c0_i32_0 = arith.constant 0 : i32
    %c0_i32_1 = arith.constant 0 : i32
    return %arg0, %c0_i32, %c0_i32_0 : i32, i32, i32
  }
  func.func @transform_7(%arg0: i32) -> (i32, i32, i32) {
    %c0_i32 = arith.constant 0 : i32
    %c0_i32_0 = arith.constant 0 : i32
    %c0_i32_1 = arith.constant 0 : i32
    return %arg0, %c0_i32, %c0_i32_0 : i32, i32, i32
  }
}

</mosaic_0001>

<llo_original>
// kernel: _forward_jit.1
$region0: #{_forward_jit.1}
  #allocation0 [shape = 'u32[]', space=smem, size = 0x4, offset = 0x4, fixed_abs, tag = 'smem constant byte address 0x4 - core index']
  #allocation1 [shape = 'u32[144,128]{1,0:T(1,128)}', space=vmem, size = 0x12000, scoped, tag = 'internal scratch']
  %s0 = inlined_call_operand.vmem [shape: bf16[1,96,64], index: 0, kind: input, shape index: {}]
  %s1 = inlined_call_operand.vmem [shape: f32[1,2,48], index: 1, kind: input, shape index: {}]
  %s2 = inlined_call_operand.vmem [shape: bf16[64,128], index: 2, kind: input, shape index: {}]
  %s3 = inlined_call_operand.vmem [shape: f32[1,128], index: 3, kind: input, shape index: {}]
  %s4 = inlined_call_operand.vmem [shape: bf16[128,128], index: 4, kind: input, shape index: {}]
  %s5 = inlined_call_operand.vmem [shape: f32[1,128], index: 5, kind: input, shape index: {}]
  %s6 = inlined_call_operand.vmem [shape: bf16[1,2,128], index: 6, kind: output, shape index: {0}]
  %s7 = inlined_call_operand.vmem [shape: bf16[1,2,128], index: 7, kind: output, shape index: {1}]
  %8 = xla_tuple %s6, %s7
  %s9 = sld [smem:[#allocation0]]
  $region42: #{_forward_jit.1} parent=0
    _
  %s11 = ssub.s32 1, %s9
  %s12 = scalar_select 0, %s11, %s9
  // Predicated region
  $region2: #{_forward_jit.1} parent=0 // pred_check
    _
  $region3: #{_forward_jit.1} parent=0 // pred_check_branch
    %14 = sbr.rel (0) target = $region5
  $region4: #{_forward_jit.1} parent=0 // pred_region
    _
  $region5: #{_forward_jit.1} parent=0 // pred_fallthru
    _
  // Predicated region
  $region6: #{_forward_jit.1} parent=0 // pred_check
    _
  $region7: #{_forward_jit.1} parent=0 // pred_check_branch
    %16 = sbr.rel (0) target = $region9
  $region8: #{_forward_jit.1} parent=0 // pred_region
    _
  $region9: #{_forward_jit.1} parent=0 // pred_fallthru
    _
  // Predicated region
  $region10: #{_forward_jit.1} parent=0 // pred_check
    _
  $region11: #{_forward_jit.1} parent=0 // pred_check_branch
    %18 = sbr.rel (0) target = $region13
  $region12: #{_forward_jit.1} parent=0 // pred_region
    _
  $region13: #{_forward_jit.1} parent=0 // pred_fallthru
    _
  // Predicated region
  $region14: #{_forward_jit.1} parent=0 // pred_check
    _
  $region15: #{_forward_jit.1} parent=0 // pred_check_branch
    %20 = sbr.rel (0) target = $region17
  $region16: #{_forward_jit.1} parent=0 // pred_region
    _
  $region17: #{_forward_jit.1} parent=0 // pred_fallthru
    _
  // Predicated region
  $region18: #{_forward_jit.1} parent=0 // pred_check
    _
  $region19: #{_forward_jit.1} parent=0 // pred_check_branch
    %22 = sbr.rel (0) target = $region21
  $region20: #{_forward_jit.1} parent=0 // pred_region
    _
  $region21: #{_forward_jit.1} parent=0 // pred_fallthru
    _
  // Predicated region
  $region22: #{_forward_jit.1} parent=0 // pred_check
    _
  $region23: #{_forward_jit.1} parent=0 // pred_check_branch
    %24 = sbr.rel (0) target = $region25
  $region24: #{_forward_jit.1} parent=0 // pred_region
    _
  $region25: #{_forward_jit.1} parent=0 // pred_fallthru
    _
  %v26 = vld [vmem:[%s0] sm:$0xf]
  %v27 = vld [vmem:[%s0 + $0x4] sm:$0xf]
  %v28 = vld [vmem:[%s0 + $0x8] sm:$0xf]
  %v29 = vld [vmem:[%s0 + $0xc] sm:$0xf]
  %v30 = vld [vmem:[%s0 + $0x10] sm:$0xf]
  %v31 = vld [vmem:[%s0 + $0x14] sm:$0xf]
  %v32 = vld [vmem:[%s0 + $0x18] sm:$0xf]
  %v33 = vld [vmem:[%s0 + $0x1c] sm:$0xf]
  %v34 = vld [vmem:[%s0 + $0x20] sm:$0xf]
  %v35 = vld [vmem:[%s0 + $0x24] sm:$0xf]
  %v36 = vld [vmem:[%s0 + $0x28] sm:$0xf]
  %v37 = vld [vmem:[%s0 + $0x2c] sm:$0xf]
  %v38 = vld [vmem:[%s2] sm:$0xf]
  %v39 = vld [vmem:[%s2 + $0x4] sm:$0xf]
  %v40 = vld [vmem:[%s2 + $0x8] sm:$0xf]
  %v41 = vld [vmem:[%s2 + $0xc] sm:$0xf]
  %v42 = vld [vmem:[%s2 + $0x10] sm:$0xf]
  %v43 = vld [vmem:[%s2 + $0x14] sm:$0xf]
  %v44 = vld [vmem:[%s2 + $0x18] sm:$0xf]
  %v45 = vld [vmem:[%s2 + $0x1c] sm:$0xf]
  %v46 = vld [vmem:[%s3] sm:$0x1]
  %v48 = vlaneseq
  %v49 = vshrl.u32 %v48, 7
  %v50 = vsub.s32 0, %v49
  %v51 = vrot.slane %v46, %v50
  %v65 = vunpack.c.l.b16 %v26
  %v66 = vunpack.c.l.b16 %v27
  %v67 = vunpack.c.l.b16 %v28
  %v68 = vunpack.c.l.b16 %v29
  %v69 = vunpack.c.l.b16 %v30
  %v70 = vunpack.c.l.b16 %v31
  %v71 = vunpack.c.l.b16 %v32
  %v72 = vunpack.c.l.b16 %v33
  %v73 = vunpack.c.l.b16 %v34
  %v74 = vunpack.c.l.b16 %v35
  %v75 = vunpack.c.l.b16 %v36
  %v76 = vunpack.c.l.b16 %v37
  %v77 = vpack.c.b16 %v66, %v65
  %v78 = vpack.c.b16 %v68, %v67
  %v79 = vpack.c.b16 %v70, %v69
  %v80 = vpack.c.b16 %v72, %v71
  %v81 = vpack.c.b16 %v74, %v73
  %v82 = vpack.c.b16 %v76, %v75
  %v91 = vunpack.c.l.b16 %v38
  %v92 = vunpack.c.l.b16 %v39
  %v93 = vunpack.c.l.b16 %v40
  %v94 = vunpack.c.l.b16 %v41
  %v95 = vunpack.c.l.b16 %v42
  %v96 = vunpack.c.l.b16 %v43
  %v97 = vunpack.c.l.b16 %v44
  %v98 = vunpack.c.l.b16 %v45
  %v99 = vpack.c.b16 %v92, %v91
  %v100 = vpack.c.b16 %v94, %v93
  %v101 = vpack.c.b16 %v96, %v95
  %v102 = vpack.c.b16 %v98, %v97
  %vm107 = vcmask 523264
  %v109 = vsel %vm107, %v77, 0
  %v112 = vsel %vm107, %v78, 0
  %v115 = vsel %vm107, %v79, 0
  %v118 = vsel %vm107, %v80, 0
  %v121 = vsel %vm107, %v81, 0
  %v124 = vsel %vm107, %v82, 0
  %126 = vmatprep.subr.bf16.mxu0 0
  %127 = vmatpush1.bf16.msra.mxu0 %v99
  %128 = vmatprep.subr.bf16.mxu0 0
  %129 = vmatpush1.bf16.msra.mxu0 %v100
  %130 = vmatprep.subr.bf16.mxu0 0
  %131 = vmatpush1.bf16.msra.mxu0 %v101
  %132 = vmatprep.subr.bf16.mxu0 0
  %133 = vmatpush1.bf16.msra.mxu0 %v102
  %134 = vmatprep.subr.bf16.mxu0 0
  %135 = vmatpush1.bf16.msra.mxu0 0
  %136 = vmatprep.subr.bf16.mxu0 0
  %137 = vmatpush1.bf16.msra.mxu0 0
  %138 = vmatprep.subr.bf16.mxu0 0
  %139 = vmatpush1.bf16.msra.mxu0 0
  %140 = vmatprep.subr.bf16.mxu0 0
  %141 = vmatpush1.bf16.msra.mxu0 0
  %142 = vmatprep.subr.bf16.mxu0 0
  %143 = vmatpush1.bf16.msra.mxu0 0
  %144 = vmatprep.subr.bf16.mxu0 0
  %145 = vmatpush1.bf16.msra.mxu0 0
  %146 = vmatprep.subr.bf16.mxu0 0
  %147 = vmatpush1.bf16.msra.mxu0 0
  %148 = vmatprep.subr.bf16.mxu0 0
  %149 = vmatpush1.bf16.msra.mxu0 0
  %150 = vmatprep.subr.bf16.mxu0 0
  %151 = vmatpush1.bf16.msra.mxu0 0
  %152 = vmatprep.subr.bf16.mxu0 0
  %153 = vmatpush1.bf16.msra.mxu0 0
  %154 = vmatprep.subr.bf16.mxu0 0
  %155 = vmatpush1.bf16.msra.mxu0 0
  %156 = vmatprep.subr.bf16.mxu0 0
  %157 = vmatpush1.bf16.msra.mxu0 0
  %158 = vmatprep.mubr.bf16.mxu0 0
  %159 = vmatmul.mubr.bf16.gmra.mrb[0].mxu0 %v109
  %v160 = vpop.f32.mrb[0].mxu0
  %v161 = vadd.f32 %v51, %v160
  %v162 = vpop.f32.mrb[0].mxu0
  %v163 = vpop.f32.mrb[0].mxu0
  %v164 = vadd.f32 %v51, %v163
  %v165 = vpop.f32.mrb[0].mxu0
  %166 = vmatprep.mubr.bf16.mxu0 0
  %167 = vmatmul.mubr.bf16.gmra.mrb[0].mxu0 %v112
  %v168 = vpop.f32.mrb[0].mxu0
  %v169 = vadd.f32 %v51, %v168
  %v170 = vpop.f32.mrb[0].mxu0
  %v171 = vpop.f32.mrb[0].mxu0
  %v172 = vadd.f32 %v51, %v171
  %v173 = vpop.f32.mrb[0].mxu0
  %174 = vmatprep.mubr.bf16.mxu0 0
  %175 = vmatmul.mubr.bf16.gmra.mrb[0].mxu0 %v115
  %v176 = vpop.f32.mrb[0].mxu0
  %v177 = vadd.f32 %v51, %v176
  %v178 = vpop.f32.mrb[0].mxu0
  %v179 = vpop.f32.mrb[0].mxu0
  %v180 = vadd.f32 %v51, %v179
  %v181 = vpop.f32.mrb[0].mxu0
  %182 = vmatprep.mubr.bf16.mxu0 0
  %183 = vmatmul.mubr.bf16.gmra.mrb[0].mxu0 %v118
  %v184 = vpop.f32.mrb[0].mxu0
  %v185 = vadd.f32 %v51, %v184
  %v186 = vpop.f32.mrb[0].mxu0
  %v187 = vpop.f32.mrb[0].mxu0
  %v188 = vadd.f32 %v51, %v187
  %v189 = vpop.f32.mrb[0].mxu0
  %190 = vmatprep.mubr.bf16.mxu0 0
  %191 = vmatmul.mubr.bf16.gmra.mrb[0].mxu0 %v121
  %v192 = vpop.f32.mrb[0].mxu0
  %v193 = vadd.f32 %v51, %v192
  %v194 = vpop.f32.mrb[0].mxu0
  %v195 = vpop.f32.mrb[0].mxu0
  %v196 = vadd.f32 %v51, %v195
  %v197 = vpop.f32.mrb[0].mxu0
  %198 = vmatprep.mubr.bf16.mxu0 0
  %199 = vmatmul.mubr.bf16.gmra.mrb[0].mxu0 %v124
  %v200 = vpop.f32.mrb[0].mxu0
  %v201 = vadd.f32 %v51, %v200
  %v202 = vpop.f32.mrb[0].mxu0
  %v203 = vpop.f32.mrb[0].mxu0
  %v204 = vadd.f32 %v51, %v203
  %v205 = vpop.f32.mrb[0].mxu0
  %206 = vdwg.mxu0
  %v207 = vmax.f32 %v161, 0.0
  %v208 = vmax.f32 %v164, 0.0
  %v209 = vmax.f32 %v169, 0.0
  %v210 = vmax.f32 %v172, 0.0
  %v211 = vmax.f32 %v177, 0.0
  %v212 = vmax.f32 %v180, 0.0
  %v213 = vmax.f32 %v185, 0.0
  %v214 = vmax.f32 %v188, 0.0
  %v215 = vmax.f32 %v193, 0.0
  %v216 = vmax.f32 %v196, 0.0
  %v217 = vmax.f32 %v201, 0.0
  %v218 = vmax.f32 %v204, 0.0
  %v219 = vld [vmem:[%s1] sm:$0x3]
  %v220 = vlaneseq
  %v221 = vshrl.u32 %v220, 7
  %v222 = vsub.s32 0, %v221
  %v223 = vrot.slane %v219, %v222
  %225 = vbcast.lane.b32.xlu0 %v223, 256
  %v226 = vpop.permute.xlu0 %225
  %s228 = sor.u32 256, 8
  %229 = vbcast.lane.b32.xlu0 %v223, %s228
  %v230 = vpop.permute.xlu0 %229
  %s232 = sor.u32 256, 16
  %233 = vbcast.lane.b32.xlu0 %v223, %s232
  %v234 = vpop.permute.xlu0 %233
  %s236 = sor.u32 256, 24
  %237 = vbcast.lane.b32.xlu0 %v223, %s236
  %v238 = vpop.permute.xlu0 %237
  %s240 = sor.u32 256, 32
  %241 = vbcast.lane.b32.xlu0 %v223, %s240
  %v242 = vpop.permute.xlu0 %241
  %s244 = sor.u32 256, 40
  %245 = vbcast.lane.b32.xlu0 %v223, %s244
  %v246 = vpop.permute.xlu0 %245
  %v247 = vlaneseq
  %v248 = vshrl.u32 %v247, 7
  %v249 = vsub.s32 1, %v248
  %v250 = vrot.slane %v219, %v249
  %252 = vbcast.lane.b32.xlu0 %v250, 256
  %v253 = vpop.permute.xlu0 %252
  %s255 = sor.u32 256, 8
  %256 = vbcast.lane.b32.xlu0 %v250, %s255
  %v257 = vpop.permute.xlu0 %256
  %s259 = sor.u32 256, 16
  %260 = vbcast.lane.b32.xlu0 %v250, %s259
  %v261 = vpop.permute.xlu0 %260
  %s263 = sor.u32 256, 24
  %264 = vbcast.lane.b32.xlu0 %v250, %s263
  %v265 = vpop.permute.xlu0 %264
  %s267 = sor.u32 256, 32
  %268 = vbcast.lane.b32.xlu0 %v250, %s267
  %v269 = vpop.permute.xlu0 %268
  %s271 = sor.u32 256, 40
  %272 = vbcast.lane.b32.xlu0 %v250, %s271
  %v273 = vpop.permute.xlu0 %272
  %v274 = vmul.f32 %v226, %v207
  %v275 = vmul.f32 %v230, %v208
  %v276 = vmul.f32 %v234, %v209
  %v277 = vmul.f32 %v238, %v210
  %v278 = vmul.f32 %v242, %v211
  %v279 = vmul.f32 %v246, %v212
  %v280 = vmul.f32 %v253, %v213
  %v281 = vmul.f32 %v257, %v214
  %v282 = vmul.f32 %v261, %v215
  %v283 = vmul.f32 %v265, %v216
  %v284 = vmul.f32 %v269, %v217
  %v285 = vmul.f32 %v273, %v218
  %v286 = vadd.f32 %v274, %v275
  %v287 = vadd.f32 %v286, %v276
  %v288 = vadd.f32 %v287, %v277
  %v289 = vadd.f32 %v288, %v278
  %v290 = vadd.f32 %v289, %v279
  %v291 = vrot.slane %v290, 4
  %v292 = vadd.f32 %v290, %v291
  %v293 = vrot.slane %v292, 2
  %v294 = vadd.f32 %v292, %v293
  %v295 = vrot.slane %v294, 1
  %v296 = vadd.f32 %v294, %v295
  %v297 = vadd.f32 %v280, %v281
  %v298 = vadd.f32 %v297, %v282
  %v299 = vadd.f32 %v298, %v283
  %v300 = vadd.f32 %v299, %v284
  %v301 = vadd.f32 %v300, %v285
  %v302 = vrot.slane %v301, 4
  %v303 = vadd.f32 %v301, %v302
  %v304 = vrot.slane %v303, 2
  %v305 = vadd.f32 %v303, %v304
  %v306 = vrot.slane %v305, 1
  %v307 = vadd.f32 %v305, %v306
  %vm308 = vcmask 386048
  %v309 = vsel %vm308, %v219, 0.0
  %310 = vadd.xlane.f32.xlu0 %v309
  %v311 = vpop.xlane.xlu0 %310
  %v312 = vpack.c.bf16 %v296, %v296
  %v313 = vpack.c.bf16 %v307, %v307
  %v314 = vld [vmem:[%s4] sm:$0xf]
  %v315 = vld [vmem:[%s4 + $0x4] sm:$0xf]
  %v316 = vld [vmem:[%s4 + $0x8] sm:$0xf]
  %v317 = vld [vmem:[%s4 + $0xc] sm:$0xf]
  %v318 = vld [vmem:[%s4 + $0x10] sm:$0xf]
  %v319 = vld [vmem:[%s4 + $0x14] sm:$0xf]
  %v320 = vld [vmem:[%s4 + $0x18] sm:$0xf]
  %v321 = vld [vmem:[%s4 + $0x1c] sm:$0xf]
  %v322 = vld [vmem:[%s4 + $0x20] sm:$0xf]
  %v323 = vld [vmem:[%s4 + $0x24] sm:$0xf]
  %v324 = vld [vmem:[%s4 + $0x28] sm:$0xf]
  %v325 = vld [vmem:[%s4 + $0x2c] sm:$0xf]
  %v326 = vld [vmem:[%s4 + $0x30] sm:$0xf]
  %v327 = vld [vmem:[%s4 + $0x34] sm:$0xf]
  %v328 = vld [vmem:[%s4 + $0x38] sm:$0xf]
  %v329 = vld [vmem:[%s4 + $0x3c] sm:$0xf]
  %v330 = vld [vmem:[%s5] sm:$0x1]
  %v332 = vlaneseq
  %v333 = vshrl.u32 %v332, 7
  %v334 = vsub.s32 0, %v333
  %v335 = vrot.slane %v330, %v334
  %v337 = vmul.f32 %v311, %v335
  %v340 = vunpack.c.l.b16 %v312
  %v341 = vunpack.c.l.b16 %v313
  %vm342 = vcmask 1041409
  %v343 = vsel %vm342, %v341, %v340
  %v344 = vpack.c.b16 %v343, %v343
  %v362 = vunpack.c.l.b16 %v314
  %v363 = vunpack.c.l.b16 %v315
  %v364 = vunpack.c.l.b16 %v316
  %v365 = vunpack.c.l.b16 %v317
  %v366 = vunpack.c.l.b16 %v318
  %v367 = vunpack.c.l.b16 %v319
  %v368 = vunpack.c.l.b16 %v320
  %v369 = vunpack.c.l.b16 %v321
  %v370 = vunpack.c.l.b16 %v322
  %v371 = vunpack.c.l.b16 %v323
  %v372 = vunpack.c.l.b16 %v324
  %v373 = vunpack.c.l.b16 %v325
  %v374 = vunpack.c.l.b16 %v326
  %v375 = vunpack.c.l.b16 %v327
  %v376 = vunpack.c.l.b16 %v328
  %v377 = vunpack.c.l.b16 %v329
  %v378 = vpack.c.b16 %v363, %v362
  %v379 = vpack.c.b16 %v365, %v364
  %v380 = vpack.c.b16 %v367, %v366
  %v381 = vpack.c.b16 %v369, %v368
  %v382 = vpack.c.b16 %v371, %v370
  %v383 = vpack.c.b16 %v373, %v372
  %v384 = vpack.c.b16 %v375, %v374
  %v385 = vpack.c.b16 %v377, %v376
  %394 = vmatprep.subr.bf16.mxu0 0
  %395 = vmatpush1.bf16.msra.mxu0 %v378
  %396 = vmatprep.subr.bf16.mxu0 0
  %397 = vmatpush1.bf16.msra.mxu0 %v379
  %398 = vmatprep.subr.bf16.mxu0 0
  %399 = vmatpush1.bf16.msra.mxu0 %v380
  %400 = vmatprep.subr.bf16.mxu0 0
  %401 = vmatpush1.bf16.msra.mxu0 %v381
  %402 = vmatprep.subr.bf16.mxu0 0
  %403 = vmatpush1.bf16.msra.mxu0 %v382
  %404 = vmatprep.subr.bf16.mxu0 0
  %405 = vmatpush1.bf16.msra.mxu0 %v383
  %406 = vmatprep.subr.bf16.mxu0 0
  %407 = vmatpush1.bf16.msra.mxu0 %v384
  %408 = vmatprep.subr.bf16.mxu0 0
  %409 = vmatpush1.bf16.msra.mxu0 %v385
  %410 = vmatprep.subr.bf16.mxu0 0
  %411 = vmatpush1.bf16.msra.mxu0 0
  %412 = vmatprep.subr.bf16.mxu0 0
  %413 = vmatpush1.bf16.msra.mxu0 0
  %414 = vmatprep.subr.bf16.mxu0 0
  %415 = vmatpush1.bf16.msra.mxu0 0
  %416 = vmatprep.subr.bf16.mxu0 0
  %417 = vmatpush1.bf16.msra.mxu0 0
  %418 = vmatprep.subr.bf16.mxu0 0
  %419 = vmatpush1.bf16.msra.mxu0 0
  %420 = vmatprep.subr.bf16.mxu0 0
  %421 = vmatpush1.bf16.msra.mxu0 0
  %422 = vmatprep.subr.bf16.mxu0 0
  %423 = vmatpush1.bf16.msra.mxu0 0
  %424 = vmatprep.subr.bf16.mxu0 0
  %425 = vmatpush1.bf16.msra.mxu0 0
  %426 = vmatprep.mubr.bf16.mxu0 0
  %427 = vmatmul.mubr.bf16.gmra.mrb[0].mxu0 %v344
  %v428 = vpop.f32.mrb[0].mxu0
  %v429 = vadd.f32 %v337, %v428
  %v430 = vpop.f32.mrb[0].mxu0
  %v431 = vpop.f32.mrb[0].mxu0
  %v432 = vpop.f32.mrb[0].mxu0
  %433 = vdwg.mxu0
  %v435 = vunpack.c.l.s4 1966171168
  %v436 = vunpack.c.0.s8 %v435
  %v437 = vlaneseq
  %v438 = vshrl.u32 %v437, 7
  %v439 = vsub.s32 %v436, %v438
  %v440 = vrot.slane %v312, %v439
  %v442 = vunpack.c.l.s4 1966171168
  %v443 = vunpack.c.0.s8 %v442
  %v444 = vlaneseq
  %v445 = vshrl.u32 %v444, 7
  %v446 = vsub.s32 %v443, %v445
  %v447 = vrot.slane %v440, %v446
  %v449 = vunpack.c.l.s4 1966171168
  %v450 = vunpack.c.0.s8 %v449
  %v451 = vlaneseq
  %v452 = vshrl.u32 %v451, 7
  %v453 = vsub.s32 %v450, %v452
  %v454 = vrot.slane %v313, %v453
  %v456 = vunpack.c.l.s4 1966171168
  %v457 = vunpack.c.0.s8 %v456
  %v458 = vlaneseq
  %v459 = vshrl.u32 %v458, 7
  %v460 = vsub.s32 %v457, %v459
  %v461 = vrot.slane %v454, %v460
  %v463 = vunpack.c.l.s4 1935823168
  %v464 = vunpack.c.0.s8 %v463
  %v465 = vlaneseq
  %v466 = vshrl.u32 %v465, 7
  %v467 = vsub.s32 %v464, %v466
  %v468 = vrot.slane %v447, %v467
  %v470 = vunpack.c.l.s4 1935823168
  %v471 = vunpack.c.0.s8 %v470
  %v472 = vlaneseq
  %v473 = vshrl.u32 %v472, 7
  %v474 = vsub.s32 %v471, %v473
  %v475 = vrot.slane %v468, %v474
  %v477 = vunpack.c.l.s4 1935823168
  %v478 = vunpack.c.0.s8 %v477
  %v479 = vlaneseq
  %v480 = vshrl.u32 %v479, 7
  %v481 = vsub.s32 %v478, %v480
  %v482 = vrot.slane %v461, %v481
  %v484 = vunpack.c.l.s4 1935823168
  %v485 = vunpack.c.0.s8 %v484
  %v486 = vlaneseq
  %v487 = vshrl.u32 %v486, 7
  %v488 = vsub.s32 %v485, %v487
  %v489 = vrot.slane %v482, %v488
  %v490 = vunpack.c.l.b16 %v475
  %v491 = vunpack.c.l.b16 %v489
  %v492 = vrot.slane %v491, 7
  %v493 = vsel %vm342, %v492, %v490
  %v494 = vpack.c.b16 %v493, %v493
  %v496 = vunpack.c.l.s4 1966171168
  %v497 = vunpack.c.0.s8 %v496
  %v498 = vlaneseq
  %v499 = vshrl.u32 %v498, 7
  %v500 = vsub.s32 %v497, %v499
  %v501 = vrot.slane %v494, %v500
  %v503 = vunpack.c.l.s4 1966171168
  %v504 = vunpack.c.0.s8 %v503
  %v505 = vlaneseq
  %v506 = vshrl.u32 %v505, 7
  %v507 = vsub.s32 %v504, %v506
  %v508 = vrot.slane %v501, %v507
  %510 = vst [vmem:[%s6] sm:$0x1] %v508
  %v511 = vpack.c.bf16 %v429, %v429
  %512 = vst [vmem:[%s7] sm:$0x1] %v511
  // Predicated region
  $region26: #{_forward_jit.1} parent=0 // pred_check
    _
  $region27: #{_forward_jit.1} parent=0 // pred_check_branch
    %514 = sbr.rel (0) target = $region29
  $region28: #{_forward_jit.1} parent=0 // pred_region
    _
  $region29: #{_forward_jit.1} parent=0 // pred_fallthru
    _
  // Predicated region
  $region30: #{_forward_jit.1} parent=0 // pred_check
    _
  $region31: #{_forward_jit.1} parent=0 // pred_check_branch
    %516 = sbr.rel (0) target = $region33
  $region32: #{_forward_jit.1} parent=0 // pred_region
    _
  $region33: #{_forward_jit.1} parent=0 // pred_fallthru
    _
  // Predicated region
  $region34: #{_forward_jit.1} parent=0 // pred_check
    _
  $region35: #{_forward_jit.1} parent=0 // pred_check_branch
    %518 = sbr.rel (0) target = $region37
  $region36: #{_forward_jit.1} parent=0 // pred_region
    _
  $region37: #{_forward_jit.1} parent=0 // pred_fallthru
    _
  // Predicated region
  $region38: #{_forward_jit.1} parent=0 // pred_check
    _
  $region39: #{_forward_jit.1} parent=0 // pred_check_branch
    %520 = sbr.rel (0) target = $region41
  $region40: #{_forward_jit.1} parent=0 // pred_region
    _
  $region41: #{_forward_jit.1} parent=0 // pred_fallthru
    _

</llo_original>
